<compile_context>
chip_gen: v5e
topology: v5e:2x2
jax: 0.10.0
libtpu: 0.0.40
codegen_flags: <defaults>
</compile_context>

<pallas_src>
import functools

import jax
import jax.numpy as jnp
from jax.experimental import pallas as pl
from jax.experimental.pallas import tpu as pltpu

O_PAD = 128   # lane-dense padded output width (real output width is 4)
B_SUB = 16    # sublane-dense padded batch (bf16 packs 16 sublanes per vreg)


def _tpu_generation_defaults():
    """Per-generation constants: (#TensorCores, vmem_limit_bytes).

    v5e/v6e: 1 TC, 128 MiB physical VMEM.  v7x: 2 TCs, 64 MiB physical VMEM.
    The limit is ~80% of physical (headroom for compiler-internal scratch),
    capped at 112 MiB.
    """
    kind = ""
    try:
        kind = jax.devices()[0].device_kind.lower()
    except Exception:
        pass
    is_v7 = "v7" in kind
    n_cores = 2 if is_v7 else 1
    vmem_phys = (64 if is_v7 else 128) * 1024 * 1024
    try:
        vmem_phys = int(pltpu.get_tpu_info().vmem_capacity_bytes)
    except Exception:
        pass
    vmem_limit = min((vmem_phys * 4) // 5, 112 * 1024 * 1024)
    return n_cores, vmem_limit


def mlp_kernel(x_ref, w1_ref, b1_ref, w2_ref, o_ref, h_acc):
    """Grid = (p, h, k):
         p : hidden-range chunk ("parallel" -> shards across TensorCores)
         h : hidden tile within the chunk  (reduction into the output)
         k : D (input-feature) tile        (reduction into the pre-activation)

       Per (p, h):  pre    = sum_k x[:, k-tile] @ W1[h-tile, k-tile]^T  (f32)
                    a      = relu(pre + b1[h-tile])                     (f32)
                    o_ref += a @ W2^T[h-tile, :O_PAD]                   (f32)
       o_ref's block index depends only on p, so it stays VMEM-resident across
       (h, k) and is accumulated into directly; the wrapper sums the n_par
       per-chunk partials and adds b2.
    """
    h = pl.program_id(1)
    k = pl.program_id(2)
    n_k = pl.num_programs(2)
    tile_d = w1_ref.shape[1]

    @pl.when(jnp.logical_and(h == 0, k == 0))
    def _():
        o_ref[...] = jnp.zeros_like(o_ref)

    @pl.when(k == 0)
    def _():
        h_acc[...] = jnp.zeros_like(h_acc)

    # First linear, partial over D.  x stays fully VMEM-resident; slice the
    # current D tile (lane-aligned: tile_d is a multiple of 128).
    d0 = pl.multiple_of(k * tile_d, tile_d)
    x_tile = x_ref[:, pl.ds(d0, tile_d)]
    # Transposed-RHS contraction (x (B,td) . W1 (th,td) on their last dims):
    # same "NT" form as q @ k^T in flash attention -> native MXU lowering,
    # no materialized W1-tile transpose, f32 accumulation.
    h_acc[...] += jax.lax.dot_general(
        x_tile, w1_ref[...],
        dimension_numbers=(((1,), (1,)), ((), ())),
        preferred_element_type=jnp.float32)

    # Last D tile: bias + ReLU (f32), then this hidden tile's contribution to
    # the lane-dense padded output accumulator (kept f32 end to end).
    @pl.when(k == n_k - 1)
    def _():
        a = jnp.maximum(h_acc[...] + b1_ref[...], 0.0)
        o_ref[...] += jnp.dot(a, w2_ref[...].astype(jnp.float32),
                              preferred_element_type=jnp.float32)


def prepare_params(w1, b1, w2, b2, weight_dtype=jnp.bfloat16):
    """One-time parameter prep (outside the jitted forward):
       * W1 kept in PyTorch (hidden, D) layout, cast to bf16 (no transpose).
       * W2 transposed to (hidden, O) once and zero-padded to (hidden, O_PAD).
       * Biases stay f32 (applied in the f32 epilogue).
       TODO(synk): optional ~2x HBM lever — int8 W1 (v5e/v6e) or fp8-e4m3 (v7x)
       with per-channel scales folded into the f32 epilogue (numerics decision).
    """
    Hd, D = w1.shape
    O = w2.shape[0]
    w1_p = jnp.asarray(w1, weight_dtype)
    b1_p = jnp.asarray(b1, jnp.float32).reshape(1, Hd)
    w2t_p = jnp.zeros((Hd, O_PAD), weight_dtype).at[:, :O].set(
        jnp.asarray(w2, weight_dtype).T)
    b2_p = jnp.asarray(b2, jnp.float32)
    return w1_p, b1_p, w2t_p, b2_p


@functools.partial(jax.jit,
                   static_argnames=("tile_d", "tile_h", "n_par",
                                    "vmem_limit_bytes"))
def linear_model_forward(x_nchw, w1_p, b1_p, w2t_p, b2_p, *,
                         tile_d=512, tile_h=128, n_par=1,
                         vmem_limit_bytes=96 * 1024 * 1024):
    """Flatten(1) -> Linear(D, hidden) -> ReLU -> Linear(hidden, out).

    x_nchw: (B, C, H, W) f32.  w1_p: (hidden, D) bf16, b1_p: (1, hidden) f32,
    w2t_p: (hidden, O_PAD) bf16, b2_p: (out,) f32  (from prepare_params).

    n_par / vmem_limit_bytes come from _tpu_generation_defaults():
    n_par = #TensorCores (1 on v5e/v6e, 2 on v7x).  Tile sizing for the real
    model (D=262144, hidden=2048): a W1 tile is tile_h*tile_d*2 B double-
    buffered; pick tile_h=512 with tile_d=16384-32768 on v5e/v6e (32-64 MiB
    buffered) and tile_d=8192 on v7x (16 MiB buffered inside the 64 MiB core).
    """
    B = x_nchw.shape[0]
    x = x_nchw.reshape(B, -1)                       # Flatten(1), row-major == torch
    D = x.shape[1]
    Hd = w1_p.shape[0]
    O = b2_p.shape[0]

    assert D % tile_d == 0, "D must be a multiple of tile_d"
    assert Hd % tile_h == 0, "hidden must be a multiple of tile_h"
    n_k = D // tile_d
    n_h_total = Hd // tile_h
    if n_h_total % n_par != 0:
        n_par = 1                                    # static fallback
    n_h = n_h_total // n_par

    # Sublane-dense (16-row, bf16-packed) batch + bf16 activation stream.
    B_pad = ((B + B_SUB - 1) // B_SUB) * B_SUB
    x = jnp.pad(x, ((0, B_pad - B), (0, 0))).astype(w1_p.dtype)

    grid_spec = pltpu.PrefetchScalarGridSpec(
        num_scalar_prefetch=0,
        grid=(n_par, n_h, n_k),
        in_specs=[
            # x fully resident: constant block index -> DMA'd once per core.
            pl.BlockSpec((B_pad, D), lambda p, h, k: (0, 0)),              # x
            pl.BlockSpec((tile_h, tile_d),
                         lambda p, h, k: (p * n_h + h, k)),               # W1 (Hd, D)
            pl.BlockSpec((1, tile_h),
                         lambda p, h, k: (0, p * n_h + h)),               # b1
            pl.BlockSpec((tile_h, O_PAD),
                         lambda p, h, k: (p * n_h + h, 0)),               # W2^T padded
        ],
        out_specs=pl.BlockSpec((None, B_pad, O_PAD),
                               lambda p, h, k: (p, 0, 0)),                # per-chunk partial
        scratch_shapes=[
            pltpu.VMEM((B_pad, tile_h), jnp.float32),   # pre-activation accumulator
        ],
    )

    itemsize = jnp.dtype(w1_p.dtype).itemsize
    cost = pl.CostEstimate(
        flops=2 * B_pad * D * Hd + 2 * B_pad * Hd * O_PAD,
        transcendentals=0,
        bytes_accessed=(Hd * D * itemsize                 # W1 stream (dominant)
                        + n_par * B_pad * D * itemsize    # x (resident per core)
                        + Hd * O_PAD * itemsize           # W2^T
                        + Hd * 4                          # b1
                        + n_par * B_pad * O_PAD * 4),     # partial outputs
    )

    partials = pl.pallas_call(
        mlp_kernel,
        out_shape=jax.ShapeDtypeStruct((n_par, B_pad, O_PAD), jnp.float32),
        grid_spec=grid_spec,
        compiler_params=pltpu.CompilerParams(
            # p shards across TensorCores (v7x megacore); h and k are reductions.
            dimension_semantics=("parallel", "arbitrary", "arbitrary"),
            vmem_limit_bytes=vmem_limit_bytes,
        ),
        cost_estimate=cost,
    )(x, w1_p, b1_p, w2t_p)

    # Tiny epilogue in XLA: sum the per-core partials (size-1 when n_par==1),
    # add the final bias, strip the lane/sublane padding.
    out = partials.sum(axis=0)[:B, :O] + b2_p
    return out.astype(x_nchw.dtype)


def init_params(key, in_features, hidden, out_features):
    """Deterministic init mimicking torch.nn.Linear defaults (U(+-1/sqrt(fan_in)))."""
    k1, k2, k3, k4 = jax.random.split(key, 4)
    bound1 = 1.0 / (in_features ** 0.5)
    bound2 = 1.0 / (hidden ** 0.5)
    w1 = jax.random.uniform(k1, (hidden, in_features), jnp.float32, -bound1, bound1)
    b1 = jax.random.uniform(k2, (hidden,), jnp.float32, -bound1, bound1)
    w2 = jax.random.uniform(k3, (out_features, hidden), jnp.float32, -bound2, bound2)
    b2 = jax.random.uniform(k4, (out_features,), jnp.float32, -bound2, bound2)
    return w1, b1, w2, b2


if __name__ == "__main__":
    # Small shapes consistent with the module's structure:
    # x (B, C, H, W) -> Flatten(1) -> Linear(D, hidden) -> ReLU -> Linear(hidden, 4).
    B, C, H, W = 2, 4, 16, 16
    D = C * H * W          # 1024
    HIDDEN = 256
    OUT = 4

    key = jax.random.PRNGKey(0)
    kx, kp = jax.random.split(key)
    x = jax.random.normal(kx, (B, C, H, W), jnp.float32)
    w1, b1, w2, b2 = init_params(kp, D, HIDDEN, OUT)

    params = prepare_params(w1, b1, w2, b2)
    n_par, vmem_limit = _tpu_generation_defaults()
    out = linear_model_forward(x, *params, tile_d=512, tile_h=128,
                               n_par=n_par, vmem_limit_bytes=vmem_limit)
    out = jax.block_until_ready(out)

    # Reference in plain JAX with identically bf16-rounded weights/inputs and
    # f32 math everywhere else (matches the kernel's numerics).
    xf = x.reshape(B, -1).astype(jnp.bfloat16).astype(jnp.float32)
    w1f = w1.astype(jnp.bfloat16).astype(jnp.float32)
    w2f = w2.astype(jnp.bfloat16).astype(jnp.float32)
    hid = jnp.maximum(
        jnp.dot(xf, w1f.T, precision=jax.lax.Precision.HIGHEST) + b1, 0.0)
    ref = jnp.dot(hid, w2f.T, precision=jax.lax.Precision.HIGHEST) + b2

    assert out.shape == (B, OUT)
    assert jnp.allclose(out, ref, atol=2e-2, rtol=2e-2), (out, ref)
    print("KERNEL_OK")
</pallas_src>

<mosaic_0001>
module attributes {stable_mosaic.version = 11 : i64} {
  func.func @mlp_kernel(%arg0: i32, %arg1: i32, %arg2: i32, %arg3: memref<16x1024xbf16, #tpu.memory_space<vmem>>, %arg4: memref<128x512xbf16, #tpu.memory_space<vmem>>, %arg5: memref<1x128xf32, #tpu.memory_space<vmem>>, %arg6: memref<128x128xbf16, #tpu.memory_space<vmem>>, %arg7: memref<1x16x128xf32, #tpu.memory_space<vmem>>, %arg8: memref<16x128xf32, #tpu.memory_space<vmem>>) attributes {dimension_semantics = [#tpu.dimension_semantics<parallel>, #tpu.dimension_semantics<arbitrary>, #tpu.dimension_semantics<arbitrary>], iteration_bounds = array<i64: 1, 2, 2>, scalar_prefetch = 0 : i64, scratch_operands = 1 : i64, tpu.core_type = #tpu.core_type<tc>, window_params = [{pipeline_mode = #tpu.pipeline_mode<synchronous>, transform_indices = @transform_0, window_bounds = array<i64: 16, 1024>}, {transform_indices = @transform_1, window_bounds = array<i64: 128, 512>}, {transform_indices = @transform_2, window_bounds = array<i64: 1, 128>}, {transform_indices = @transform_3, window_bounds = array<i64: 128, 128>}, {transform_indices = @transform_4, window_bounds = array<i64: 1, 16, 128>}]} {
    %c0_i32 = arith.constant 0 : i32
    %0 = arith.cmpi eq, %arg1, %c0_i32 : i32
    %c0_i32_0 = arith.constant 0 : i32
    %1 = arith.cmpi eq, %arg2, %c0_i32_0 : i32
    %2 = arith.andi %0, %1 : i1
    %3 = arith.extui %2 : i1 to i32
    %c0_i32_1 = arith.constant 0 : i32
    %4 = arith.cmpi ne, %3, %c0_i32_1 : i32
    scf.if %4 {
      %cst_11 = arith.constant 0.000000e+00 : f32
      %20 = vector.broadcast %cst_11 : f32 to vector<16x128xf32>
      %c0_12 = arith.constant 0 : index
      %c0_13 = arith.constant 0 : index
      %c0_14 = arith.constant 0 : index
      %21 = vector.load %arg7[%c0_12, %c0_13, %c0_14] : memref<1x16x128xf32, #tpu.memory_space<vmem>>, vector<1x16x128xf32>
      %22 = vector.shape_cast %21 : vector<1x16x128xf32> to vector<16x128xf32>
      %23 = vector.shape_cast %20 : vector<16x128xf32> to vector<1x16x128xf32>
      tpu.vector_store %arg7[%c0_12, %c0_13, %c0_14], %23 {strides = array<i32>} : memref<1x16x128xf32, #tpu.memory_space<vmem>>, vector<1x16x128xf32>,
    } else {
    }
    %c0_i32_2 = arith.constant 0 : i32
    %5 = arith.cmpi eq, %arg2, %c0_i32_2 : i32
    %6 = arith.extui %5 : i1 to i32
    %c0_i32_3 = arith.constant 0 : i32
    %7 = arith.cmpi ne, %6, %c0_i32_3 : i32
    scf.if %7 {
      %cst_11 = arith.constant 0.000000e+00 : f32
      %20 = vector.broadcast %cst_11 : f32 to vector<16x128xf32>
      %c0_12 = arith.constant 0 : index
      %c0_13 = arith.constant 0 : index
      %21 = vector.load %arg8[%c0_12, %c0_13] : memref<16x128xf32, #tpu.memory_space<vmem>>, vector<16x128xf32>
      tpu.vector_store %arg8[%c0_12, %c0_13], %20 {strides = array<i32>} : memref<16x128xf32, #tpu.memory_space<vmem>>, vector<16x128xf32>,
    } else {
    }
    %c512_i32 = arith.constant 512 : i32
    %8 = arith.muli %arg2, %c512_i32 : i32
    %9 = tpu.assume_multiple %8, 512 : i32
    %c0 = arith.constant 0 : index
    %10 = arith.index_cast %9 : i32 to index
    %11 = vector.load %arg3[%c0, %10] : memref<16x1024xbf16, #tpu.memory_space<vmem>>, vector<16x512xbf16>
    %c0_4 = arith.constant 0 : index
    %c0_5 = arith.constant 0 : index
    %12 = vector.load %arg8[%c0_4, %c0_5] : memref<16x128xf32, #tpu.memory_space<vmem>>, vector<16x128xf32>
    %c0_6 = arith.constant 0 : index
    %c0_7 = arith.constant 0 : index
    %13 = vector.load %arg4[%c0_6, %c0_7] : memref<128x512xbf16, #tpu.memory_space<vmem>>, vector<128x512xbf16>
    %cst = arith.constant dense<0.000000e+00> : vector<16x128xf32>
    %14 = tpu.matmul %11, %13, %cst {dimension_numbers = #tpu.dot_dimension_numbers<[1], [1], [0], [0], [0, 0, 1, 0], [], []>} : vector<16x512xbf16>, vector<128x512xbf16>, vector<16x128xf32> -> vector<16x128xf32>
    %15 = arith.addf %12, %14 : vector<16x128xf32>
    %c0_8 = arith.constant 0 : index
    %c0_9 = arith.constant 0 : index
    %16 = vector.load %arg8[%c0_8, %c0_9] : memref<16x128xf32, #tpu.memory_space<vmem>>, vector<16x128xf32>
    tpu.vector_store %arg8[%c0_8, %c0_9], %15 {strides = array<i32>} : memref<16x128xf32, #tpu.memory_space<vmem>>, vector<16x128xf32>,
    %c1_i32 = arith.constant 1 : i32
    %17 = arith.cmpi eq, %arg2, %c1_i32 : i32
    %18 = arith.extui %17 : i1 to i32
    %c0_i32_10 = arith.constant 0 : i32
    %19 = arith.cmpi ne, %18, %c0_i32_10 : i32
    scf.if %19 {
      %c0_11 = arith.constant 0 : index
      %c0_12 = arith.constant 0 : index
      %20 = vector.load %arg8[%c0_11, %c0_12] : memref<16x128xf32, #tpu.memory_space<vmem>>, vector<16x128xf32>
      %c0_13 = arith.constant 0 : index
      %c0_14 = arith.constant 0 : index
      %21 = vector.load %arg5[%c0_13, %c0_14] : memref<1x128xf32, #tpu.memory_space<vmem>>, vector<1x128xf32>
      %22 = vector.broadcast %21 : vector<1x128xf32> to vector<16x128xf32>
      %23 = arith.addf %20, %22 : vector<16x128xf32>
      %cst_15 = arith.constant 0.000000e+00 : f32
      %24 = vector.broadcast %cst_15 : f32 to vector<16x128xf32>
      %25 = arith.maximumf %23, %24 : vector<16x128xf32>
      %c0_16 = arith.constant 0 : index
      %c0_17 = arith.constant 0 : index
      %c0_18 = arith.constant 0 : index
      %26 = vector.load %arg7[%c0_16, %c0_17, %c0_18] : memref<1x16x128xf32, #tpu.memory_space<vmem>>, vector<1x16x128xf32>
      %27 = vector.shape_cast %26 : vector<1x16x128xf32> to vector<16x128xf32>
      %c0_19 = arith.constant 0 : index
      %c0_20 = arith.constant 0 : index
      %28 = vector.load %arg6[%c0_19, %c0_20] : memref<128x128xbf16, #tpu.memory_space<vmem>>, vector<128x128xbf16>
      %29 = arith.extf %28 : vector<128x128xbf16> to vector<128x128xf32>
      %cst_21 = arith.constant dense<0.000000e+00> : vector<16x128xf32>
      %30 = tpu.matmul %25, %29, %cst_21 {dimension_numbers = #tpu.dot_dimension_numbers<[1], [0], [0], [1], [0, 0, 1, 1], [], []>} : vector<16x128xf32>, vector<128x128xf32>, vector<16x128xf32> -> vector<16x128xf32>
      %31 = arith.addf %27, %30 : vector<16x128xf32>
      %c0_22 = arith.constant 0 : index
      %c0_23 = arith.constant 0 : index
      %c0_24 = arith.constant 0 : index
      %32 = vector.load %arg7[%c0_22, %c0_23, %c0_24] : memref<1x16x128xf32, #tpu.memory_space<vmem>>, vector<1x16x128xf32>
      %33 = vector.shape_cast %32 : vector<1x16x128xf32> to vector<16x128xf32>
      %34 = vector.shape_cast %31 : vector<16x128xf32> to vector<1x16x128xf32>
      tpu.vector_store %arg7[%c0_22, %c0_23, %c0_24], %34 {strides = array<i32>} : memref<1x16x128xf32, #tpu.memory_space<vmem>>, vector<1x16x128xf32>,
    } else {
    }
    return
  }
  func.func @transform_0(%arg0: i32, %arg1: i32, %arg2: i32) -> (i32, i32) {
    %c0_i32 = arith.constant 0 : i32
    %c0_i32_0 = arith.constant 0 : i32
    %c0_i32_1 = arith.constant 0 : i32
    return %c0_i32, %c0_i32_0 : i32, i32
  }
  func.func @transform_1(%arg0: i32, %arg1: i32, %arg2: i32) -> (i32, i32) {
    %c2_i32 = arith.constant 2 : i32
    %0 = arith.muli %arg0, %c2_i32 : i32
    %1 = arith.addi %0, %arg1 : i32
    %c0_i32 = arith.constant 0 : i32
    return %1, %arg2 : i32, i32
  }
  func.func @transform_2(%arg0: i32, %arg1: i32, %arg2: i32) -> (i32, i32) {
    %c2_i32 = arith.constant 2 : i32
    %0 = arith.muli %arg0, %c2_i32 : i32
    %1 = arith.addi %0, %arg1 : i32
    %c0_i32 = arith.constant 0 : i32
    %c0_i32_0 = arith.constant 0 : i32
    return %c0_i32, %1 : i32, i32
  }
  func.func @transform_3(%arg0: i32, %arg1: i32, %arg2: i32) -> (i32, i32) {
    %c2_i32 = arith.constant 2 : i32
    %0 = arith.muli %arg0, %c2_i32 : i32
    %1 = arith.addi %0, %arg1 : i32
    %c0_i32 = arith.constant 0 : i32
    %c0_i32_0 = arith.constant 0 : i32
    return %1, %c0_i32 : i32, i32
  }
  func.func @transform_4(%arg0: i32, %arg1: i32, %arg2: i32) -> (i32, i32, i32) {
    %c0_i32 = arith.constant 0 : i32
    %c0_i32_0 = arith.constant 0 : i32
    %c0_i32_1 = arith.constant 0 : i32
    return %arg0, %c0_i32, %c0_i32_0 : i32, i32, i32
  }
}

</mosaic_0001>

<llo_original>
// kernel: linear_model_forward.1
$region0: #{linear_model_forward.1}
  #allocation0 [shape = 'u32[]', space=smem, size = 0x4, offset = 0x4, fixed_abs, tag = 'smem constant byte address 0x4 - core index']
  #allocation1 [shape = 'u32[72,128]{1,0:T(1,128)}', space=vmem, size = 0x9000, scoped, tag = 'internal scratch']
  #allocation2 [shape = 'f32[16,128]{1,0:T(8,128)}', space=vmem, size = 0x2000, scoped, tag = 'scratch operand']
  %s0 = inlined_call_operand.vmem [shape: bf16[16,1024], index: 0, kind: input, shape index: {}]
  %s1 = inlined_call_operand.hbm [shape: bf16[256,1024], index: 1, kind: input, shape index: {}]
  %s2 = inlined_call_operand.vmem [shape: f32[1,256], index: 2, kind: input, shape index: {}]
  %s3 = inlined_call_operand.vmem [shape: bf16[256,128], index: 3, kind: input, shape index: {}]
  %s4 = inlined_call_operand.vmem [shape: f32[1,16,128], index: 4, kind: output, shape index: {}]
  %s5 = sld [smem:[#allocation0]]
  $region65: #{linear_model_forward.1} parent=0
    _
  %s7 = ssub.s32 1, %s5
  %s8 = scalar_select 0, %s7, %s5
  $region1: #{linear_model_forward.1} parent=0
    #allocation3 [shape = 'u8[262144]{0}', space=vmem, size = 0x40000, scoped, tag = 'input window, operand 1']
    #allocation4 [shape = 's32[2]{0}', space=sflag, size = 0x8, scoped, tag = 'scoped memory for linear_model_forward.1']
    %9 = vsyncpa [#allocation4], 0
    %s10 = scalar_lea.sflag [#allocation4], 1
    %11 = vsyncpa %s10, 0
    loop: start=0, step=1, limit=6
    $region2: #{linear_model_forward.1} parent=1 // loop_pre_header
      _
    $region3: #{linear_model_forward.1} parent=1 // loop_header
      %s13 = sphi 0, %s17
      %p14 = scmp.ge.s32.totalorder %s13, 6
      %s20 = sphi 0, %s39
      %s21 = sphi 0, %s35
      %s22 = sphi 0, %s31
      %s23 = sphi 0, %s20
      %s24 = sphi 0, %s21
      %s25 = sphi 0, %s22
      %s26 = sphi 0, %s23
      %s27 = sphi 0, %s24
      %s28 = sphi 0, %s25
      %s40 = sphi 0, %s40
      %s42 = sphi 0, %s40
      %s43 = sphi 0, %s42
      %s57 = sphi 0, %s43
      %s69 = sphi 0, %s71
      %s72 = sphi 0, %s69
      %s73 = sphi 0, %s72
      %s89 = sphi 0, %s73
      %s99 = sphi 0, %s101
      %s102 = sphi 0, %s99
      %s103 = sphi 0, %s102
      %s119 = sphi 0, %s103
      %s129 = sphi 0, %s131
      %s132 = sphi 0, %s129
      %s133 = sphi 0, %s132
      %s149 = sphi 0, %s133
      %s155 = sphi 0, %s157
      %s158 = sphi 0, %s155
      %s159 = sphi 0, %s158
      %s175 = sphi 0, %s159
    $region4: #{linear_model_forward.1} parent=1 // loop_header_branch
      %16 = sbr.rel (%p14) target = $region8
    $region5: #{linear_model_forward.1} parent=1 // loop_body
      %s18 = ssub.s32 %s13, 1
      %s19 = ssub.s32 %s13, 2
      %s29 = sadd.s32 1, %s22
      %p30 = scmp.ge.s32.totalorder %s29, 2
      %s31 = scalar_select %p30, 0, %s29
      %s32 = sadd.s32 1, %s21
      %s33 = scalar_select %p30, %s32, %s21
      %p34 = scmp.ge.s32.totalorder %s33, 2
      %s35 = scalar_select %p34, 0, %s33
      %s36 = sadd.s32 1, %s20
      %s37 = scalar_select %p34, %s36, %s20
      %p38 = scmp.ge.s32.totalorder %s37, 1
      %s39 = scalar_select %p38, 0, %s37
      %s41 = sadd.s32 %s40, 1
      %p44 = scmp.eq.s32.totalorder %s13, 3
      %p45 = scmp.ne.s32.totalorder %s40, %s42
      %p46 = scmp.eq.s32.totalorder %s13, 0
      %p47 = por %p45, %p46
      %p48 = scmp.ne.s32.totalorder %s40, %s42
      %p49 = scmp.eq.s32.totalorder %s18, 3
      %p50 = por %p48, %p49
      %p51 = scmp.ne.s32.totalorder %s42, %s43
      %p52 = scmp.eq.s32.totalorder %s18, 0
      %p53 = por %p51, %p52
      %p54 = scmp.ne.s32.totalorder %s42, %s43
      %p55 = scmp.eq.s32.totalorder %s19, 3
      %p56 = por %p54, %p55
      %p58 = scmp.ne.s32.totalorder %s43, %s57
      %p59 = scmp.eq.s32.totalorder %s19, 0
      %p60 = por %p58, %p59
      %s61 = smul.u32 %s20, 2
      %s62 = sadd.s32 %s61, %s21
      %s63 = smul.u32 %s39, 2
      %s64 = sadd.s32 %s63, %s35
      %s65 = ssub.s32 %s62, %s64
      %s66 = ssub.s32 %s22, %s31
      %s67 = sor.u32 %s65, %s66
      %p68 = scmp.eq.s32.totalorder %s67, 0
      %s70 = sadd.s32 %s69, 1
      %s71 = scalar_select %p68, %s69, %s70
      %p74 = pneg %p68
      %p75 = scmp.eq.s32.totalorder %s13, 3
      %p76 = por %p74, %p75
      %p77 = scmp.ne.s32.totalorder %s69, %s72
      %p78 = scmp.eq.s32.totalorder %s13, 0
      %p79 = por %p77, %p78
      %p80 = scmp.ne.s32.totalorder %s69, %s72
      %p81 = scmp.eq.s32.totalorder %s18, 3
      %p82 = por %p80, %p81
      %p83 = scmp.ne.s32.totalorder %s72, %s73
      %p84 = scmp.eq.s32.totalorder %s18, 0
      %p85 = por %p83, %p84
      %p86 = scmp.ne.s32.totalorder %s72, %s73
      %p87 = scmp.eq.s32.totalorder %s19, 3
      %p88 = por %p86, %p87
      %p90 = scmp.ne.s32.totalorder %s73, %s89
      %p91 = scmp.eq.s32.totalorder %s19, 0
      %p92 = por %p90, %p91
      %s93 = smul.u32 %s20, 2
      %s94 = sadd.s32 %s93, %s21
      %s95 = smul.u32 %s39, 2
      %s96 = sadd.s32 %s95, %s35
      %s97 = ssub.s32 %s94, %s96
      %p98 = scmp.eq.s32.totalorder %s97, 0
      %s100 = sadd.s32 %s99, 1
      %s101 = scalar_select %p98, %s99, %s100
      %p104 = pneg %p98
      %p105 = scmp.eq.s32.totalorder %s13, 3
      %p106 = por %p104, %p105
      %p107 = scmp.ne.s32.totalorder %s99, %s102
      %p108 = scmp.eq.s32.totalorder %s13, 0
      %p109 = por %p107, %p108
      %p110 = scmp.ne.s32.totalorder %s99, %s102
      %p111 = scmp.eq.s32.totalorder %s18, 3
      %p112 = por %p110, %p111
      %p113 = scmp.ne.s32.totalorder %s102, %s103
      %p114 = scmp.eq.s32.totalorder %s18, 0
      %p115 = por %p113, %p114
      %p116 = scmp.ne.s32.totalorder %s102, %s103
      %p117 = scmp.eq.s32.totalorder %s19, 3
      %p118 = por %p116, %p117
      %p120 = scmp.ne.s32.totalorder %s103, %s119
      %p121 = scmp.eq.s32.totalorder %s19, 0
      %p122 = por %p120, %p121
      %s123 = smul.u32 %s20, 2
      %s124 = sadd.s32 %s123, %s21
      %s125 = smul.u32 %s39, 2
      %s126 = sadd.s32 %s125, %s35
      %s127 = ssub.s32 %s124, %s126
      %p128 = scmp.eq.s32.totalorder %s127, 0
      %s130 = sadd.s32 %s129, 1
      %s131 = scalar_select %p128, %s129, %s130
      %p134 = pneg %p128
      %p135 = scmp.eq.s32.totalorder %s13, 3
      %p136 = por %p134, %p135
      %p137 = scmp.ne.s32.totalorder %s129, %s132
      %p138 = scmp.eq.s32.totalorder %s13, 0
      %p139 = por %p137, %p138
      %p140 = scmp.ne.s32.totalorder %s129, %s132
      %p141 = scmp.eq.s32.totalorder %s18, 3
      %p142 = por %p140, %p141
      %p143 = scmp.ne.s32.totalorder %s132, %s133
      %p144 = scmp.eq.s32.totalorder %s18, 0
      %p145 = por %p143, %p144
      %p146 = scmp.ne.s32.totalorder %s132, %s133
      %p147 = scmp.eq.s32.totalorder %s19, 3
      %p148 = por %p146, %p147
      %p150 = scmp.ne.s32.totalorder %s133, %s149
      %p151 = scmp.eq.s32.totalorder %s19, 0
      %p152 = por %p150, %p151
      %s153 = ssub.s32 %s20, %s39
      %p154 = scmp.eq.s32.totalorder %s153, 0
      %s156 = sadd.s32 %s155, 1
      %s157 = scalar_select %p154, %s155, %s156
      %p160 = pneg %p154
      %p161 = scmp.eq.s32.totalorder %s13, 3
      %p162 = por %p160, %p161
      %p163 = scmp.ne.s32.totalorder %s155, %s158
      %p164 = scmp.eq.s32.totalorder %s13, 0
      %p165 = por %p163, %p164
      %p166 = scmp.ne.s32.totalorder %s155, %s158
      %p167 = scmp.eq.s32.totalorder %s18, 3
      %p168 = por %p166, %p167
      %p169 = scmp.ne.s32.totalorder %s158, %s159
      %p170 = scmp.eq.s32.totalorder %s18, 0
      %p171 = por %p169, %p170
      %p172 = scmp.ne.s32.totalorder %s158, %s159
      %p173 = scmp.eq.s32.totalorder %s19, 3
      %p174 = por %p172, %p173
      %p176 = scmp.ne.s32.totalorder %s159, %s175
      %p177 = scmp.eq.s32.totalorder %s19, 0
      %p178 = por %p176, %p177
      %p179 = scmp.le.s32.totalorder 1, %s13
      %p180 = scmp.lt.s32.totalorder %s13, 5
      %p181 = pnand %p179, %p180
      %p182 = pneg %p181
      // Predicated region
      $region9: #{linear_model_forward.1} parent=5 // pred_check
        _
      $region10: #{linear_model_forward.1} parent=5 // pred_check_branch
        %184 = sbr.rel (%p181) target = $region12
      $region11: #{linear_model_forward.1} parent=5 // pred_region
        %s185 = ssub.s32 %s13, 1
        // Predicated region
        $region13: #{linear_model_forward.1} parent=11 // pred_check
          %p186 = pneg %p53
        $region14: #{linear_model_forward.1} parent=11 // pred_check_branch
          %188 = sbr.rel (%p186) target = $region16
        $region15: #{linear_model_forward.1} parent=11 // pred_region
          _
        $region16: #{linear_model_forward.1} parent=11 // pred_fallthru
          _
      $region12: #{linear_model_forward.1} parent=5 // pred_fallthru
        _
      %p189 = scmp.lt.s32.totalorder %s13, 4
      // Predicated region
      $region17: #{linear_model_forward.1} parent=5 // pred_check
        %p190 = pneg %p189
      $region18: #{linear_model_forward.1} parent=5 // pred_check_branch
        %192 = sbr.rel (%p190) target = $region20
      $region19: #{linear_model_forward.1} parent=5 // pred_region
        // Predicated region
        $region21: #{linear_model_forward.1} parent=19 // pred_check
          %p193 = pneg %p79
        $region22: #{linear_model_forward.1} parent=19 // pred_check_branch
          %195 = sbr.rel (%p193) target = $region24
        $region23: #{linear_model_forward.1} parent=19 // pred_region
          %s196 = sand.u32 %s69, 1
          %s197 = scalar_lea.sflag [#allocation4], %s196
          %s198 = sand.u32 %s69, 1
          %s199 = smul.addr %s198, 256
          %s200 = scalar_lea.vmem [#allocation3], %s199
          %s201 = smul.u32 %s20, 2
          %s202 = sadd.s32 %s201, %s21
          %s203 = smul.u32 16, %s202
          %s204 = smul.u32 4, %s22
          %206 = vsyncadd %s197, 0
          %s207 = smul.addr %s203, 8
          %s208 = sadd.s32 %s204, %s207
          %s209 = smul.addr %s208, 4
          %s210 = scalar_lea.hbm %s1, %s209
          %s211 = sshll.u32 %s210, 4
          %s212 = int_to_ptr.hbm [resolvable:$true] %s211
          %s213 = sshll.u32 %s200, 4
          %s214 = int_to_ptr.vmem [resolvable:$true] %s213
          %219 = dma.hbm_to_vmem [thread:$0]  %s212, 4096, %s214, %s197, 512, 256, 16
        $region24: #{linear_model_forward.1} parent=19 // pred_fallthru
          _
        // Predicated region
        $region25: #{linear_model_forward.1} parent=19 // pred_check
          %p220 = pneg %p109
        $region26: #{linear_model_forward.1} parent=19 // pred_check_branch
          %222 = sbr.rel (%p220) target = $region28
        $region27: #{linear_model_forward.1} parent=19 // pred_region
          %s223 = smul.u32 %s20, 2
          %s224 = sadd.s32 %s223, %s21
          %p225 = scmp.lt.s32.totalorder %s224, 1
          %s226 = scalar_select %p225, %s224, 1
          %s227 = scalar_lea.vmem %s2, %s226
          %s228 = smul.u32 %s20, 2
          %s229 = sadd.s32 %s228, %s21
        $region28: #{linear_model_forward.1} parent=19 // pred_fallthru
          _
        // Predicated region
        $region29: #{linear_model_forward.1} parent=19 // pred_check
          %p230 = pneg %p139
        $region30: #{linear_model_forward.1} parent=19 // pred_check_branch
          %232 = sbr.rel (%p230) target = $region32
        $region31: #{linear_model_forward.1} parent=19 // pred_region
          %s233 = smul.u32 %s20, 2
          %s234 = sadd.s32 %s233, %s21
          %s235 = smul.u32 16, %s234
          %p236 = scmp.lt.s32.totalorder %s235, 31
          %s237 = scalar_select %p236, %s235, 31
          %s238 = smul.addr %s237, 4
          %s239 = scalar_lea.vmem %s3, %s238
          %s240 = smul.u32 %s20, 2
          %s241 = sadd.s32 %s240, %s21
          %s242 = smul.u32 16, %s241
        $region32: #{linear_model_forward.1} parent=19 // pred_fallthru
          _
      $region20: #{linear_model_forward.1} parent=5 // pred_fallthru
        _
      %p243 = scmp.le.s32.totalorder 1, %s13
      %p244 = scmp.lt.s32.totalorder %s13, 5
      %p245 = pnand %p243, %p244
      %p246 = pneg %p245
      // Predicated region
      $region33: #{linear_model_forward.1} parent=5 // pred_check
        _
      $region34: #{linear_model_forward.1} parent=5 // pred_check_branch
        %248 = sbr.rel (%p245) target = $region36
      $region35: #{linear_model_forward.1} parent=5 // pred_region
        %s249 = ssub.s32 %s13, 1
        %s250 = sand.u32 %s72, 1
        %s251 = scalar_lea.sflag [#allocation4], %s250
        %s252 = sand.u32 %s72, 1
        %s253 = smul.addr %s252, 256
        %s254 = scalar_lea.vmem [#allocation3], %s253
        // Predicated region
        $region37: #{linear_model_forward.1} parent=35 // pred_check
          %p255 = pneg %p85
        $region38: #{linear_model_forward.1} parent=35 // pred_check_branch
          %257 = sbr.rel (%p255) target = $region40
        $region39: #{linear_model_forward.1} parent=35 // pred_region
          %259 = dma.done %s251, 4096
        $region40: #{linear_model_forward.1} parent=35 // pred_fallthru
          _
        %p260 = pneg %p53
        %p261 = pneg %p50
        %s262 = sand.u32 %s72, 1
        %s263 = scalar_lea.sflag [#allocation4], %s262
        %s264 = sand.u32 %s72, 1
        %s265 = smul.addr %s264, 256
        %s266 = scalar_lea.vmem [#allocation3], %s265
        %p267 = pneg %p85
        %p268 = pneg %p82
        %s269 = smul.u32 %s23, 2
        %s270 = sadd.s32 %s269, %s24
        %p271 = scmp.lt.s32.totalorder %s270, 1
        %s272 = scalar_select %p271, %s270, 1
        %s273 = scalar_lea.vmem %s2, %s272
        %p274 = pneg %p115
        %p275 = pneg %p112
        %s276 = smul.u32 %s23, 2
        %s277 = sadd.s32 %s276, %s24
        %s278 = smul.u32 16, %s277
        %p279 = scmp.lt.s32.totalorder %s278, 31
        %s280 = scalar_select %p279, %s278, 31
        %s281 = smul.addr %s280, 4
        %s282 = scalar_lea.vmem %s3, %s281
        %p283 = pneg %p145
        %p284 = pneg %p142
        %p285 = pneg %p171
        %p286 = pneg %p168
        %p287 = scmp.lt.s32.totalorder %s23, 0
        %s288 = scalar_select %p287, %s23, 0
        %s289 = smul.addr %s288, 2
        %s290 = smul.addr %s289, 8
        %s291 = scalar_lea.vmem %s4, %s290
        %s292 = smul.u32 %s23, 2
        %s293 = sadd.s32 %s292, %s24
        %s294 = smul.u32 16, %s293
        %s295 = smul.u32 4, %s25
        %s296 = smul.u32 %s23, 2
        %s297 = sadd.s32 %s296, %s24
        %p298 = scmp.lt.s32.totalorder %s297, 1
        %s299 = scalar_select %p298, %s297, 1
        %s300 = scalar_lea.vmem %s2, %s299
        %s301 = smul.u32 %s23, 2
        %s302 = sadd.s32 %s301, %s24
        %s303 = smul.u32 %s23, 2
        %s304 = sadd.s32 %s303, %s24
        %s305 = smul.u32 16, %s304
        %p306 = scmp.lt.s32.totalorder %s305, 31
        %s307 = scalar_select %p306, %s305, 31
        %s308 = smul.addr %s307, 4
        %s309 = scalar_lea.vmem %s3, %s308
        %s310 = smul.u32 %s23, 2
        %s311 = sadd.s32 %s310, %s24
        %s312 = smul.u32 16, %s311
        %p313 = scmp.lt.s32.totalorder %s23, 0
        %s314 = scalar_select %p313, %s23, 0
        %s315 = smul.addr %s314, 2
        %s316 = smul.addr %s315, 8
        %s317 = scalar_lea.vmem %s4, %s316
        %p318 = scmp.eq.s32.totalorder %s24, 0
        %p319 = scmp.eq.s32.totalorder %s25, 0
        %p320 = pnand %p318, %p319
        %p321 = pneg %p320
        // Predicated region
        $region41: #{linear_model_forward.1} parent=35 // pred_check
          _
        $region42: #{linear_model_forward.1} parent=35 // pred_check_branch
          %323 = sbr.rel (%p320) target = $region44
        $region43: #{linear_model_forward.1} parent=35 // pred_region
          %324 = vst [vmem:[%s317] sm:$0xff] 0.0
          %325 = vst [vmem:[%s317 + $0x8] sm:$0xff] 0.0
        $region44: #{linear_model_forward.1} parent=35 // pred_fallthru
          _
        // Predicated region
        $region45: #{linear_model_forward.1} parent=35 // pred_check
          %p326 = pneg %p319
        $region46: #{linear_model_forward.1} parent=35 // pred_check_branch
          %328 = sbr.rel (%p326) target = $region48
        $region47: #{linear_model_forward.1} parent=35 // pred_region
          %329 = vst [vmem:[#allocation2] sm:$0xff] 0.0
          %330 = vst [vmem:[#allocation2 + $0x8] sm:$0xff] 0.0
        $region48: #{linear_model_forward.1} parent=35 // pred_fallthru
          _
        %s331 = smul.u32 %s25, 512
        %s332 = sshra.s32 %s331, 7
        %s333 = sand.u32 %s331, 127
        %s334 = smul.addr %s332, 4
        %s335 = scalar_lea.vmem %s0, %s334
        %v336 = vld [vmem:[%s335] sm:$0xff]
        %v337 = vld [vmem:[%s335 + $0x8] sm:$0xff]
        %v338 = vld [vmem:[%s335 + $0x20] sm:$0xff]
        %v339 = vld [vmem:[%s335 + $0x28] sm:$0xff]
        %v340 = vld [vmem:[#allocation2] sm:$0xff]
        %v341 = vld [vmem:[#allocation2 + $0x8] sm:$0xff]
        %v342 = vld [vmem:[%s254] sm:$0xff]
        %v343 = vld [vmem:[%s254 + $0x8] sm:$0xff]
        %v344 = vld [vmem:[%s254 + $0x10] sm:$0xff]
        %v345 = vld [vmem:[%s254 + $0x18] sm:$0xff]
        %v346 = vld [vmem:[%s254 + $0x20] sm:$0xff]
        %v347 = vld [vmem:[%s254 + $0x28] sm:$0xff]
        %v348 = vld [vmem:[%s254 + $0x30] sm:$0xff]
        %v349 = vld [vmem:[%s254 + $0x38] sm:$0xff]
        %v350 = vld [vmem:[%s254 + $0x40] sm:$0xff]
        %v351 = vld [vmem:[%s254 + $0x48] sm:$0xff]
        %v352 = vld [vmem:[%s254 + $0x50] sm:$0xff]
        %v353 = vld [vmem:[%s254 + $0x58] sm:$0xff]
        %v354 = vld [vmem:[%s254 + $0x60] sm:$0xff]
        %v355 = vld [vmem:[%s254 + $0x68] sm:$0xff]
        %v356 = vld [vmem:[%s254 + $0x70] sm:$0xff]
        %v357 = vld [vmem:[%s254 + $0x78] sm:$0xff]
        %v358 = vld [vmem:[%s254 + $0x80] sm:$0xff]
        %v359 = vld [vmem:[%s254 + $0x88] sm:$0xff]
        %v360 = vld [vmem:[%s254 + $0x90] sm:$0xff]
        %v361 = vld [vmem:[%s254 + $0x98] sm:$0xff]
        %v362 = vld [vmem:[%s254 + $0xa0] sm:$0xff]
        %v363 = vld [vmem:[%s254 + $0xa8] sm:$0xff]
        %v364 = vld [vmem:[%s254 + $0xb0] sm:$0xff]
        %v365 = vld [vmem:[%s254 + $0xb8] sm:$0xff]
        %v366 = vld [vmem:[%s254 + $0xc0] sm:$0xff]
        %v367 = vld [vmem:[%s254 + $0xc8] sm:$0xff]
        %v368 = vld [vmem:[%s254 + $0xd0] sm:$0xff]
        %v369 = vld [vmem:[%s254 + $0xd8] sm:$0xff]
        %v370 = vld [vmem:[%s254 + $0xe0] sm:$0xff]
        %v371 = vld [vmem:[%s254 + $0xe8] sm:$0xff]
        %v372 = vld [vmem:[%s254 + $0xf0] sm:$0xff]
        %v373 = vld [vmem:[%s254 + $0xf8] sm:$0xff]
        %v378 = vunpack.c.l.b16 %v336
        %v379 = vunpack.c.h.b16 %v336
        %v380 = vunpack.c.l.b16 %v337
        %v381 = vunpack.c.h.b16 %v337
        %v382 = vunpack.c.l.b16 %v338
        %v383 = vunpack.c.h.b16 %v338
        %v384 = vunpack.c.l.b16 %v339
        %v385 = vunpack.c.h.b16 %v339
        %v386 = vpack.c.b16 %v382, %v378
        %v387 = vpack.c.b16 %v383, %v379
        %v388 = vpack.c.b16 %v384, %v380
        %v389 = vpack.c.b16 %v385, %v381
        %v426 = vunpack.c.l.b16 %v342
        %v427 = vunpack.c.h.b16 %v342
        %v428 = vunpack.c.l.b16 %v343
        %v429 = vunpack.c.h.b16 %v343
        %v430 = vunpack.c.l.b16 %v344
        %v431 = vunpack.c.h.b16 %v344
        %v432 = vunpack.c.l.b16 %v345
        %v433 = vunpack.c.h.b16 %v345
        %v434 = vunpack.c.l.b16 %v346
        %v435 = vunpack.c.h.b16 %v346
        %v436 = vunpack.c.l.b16 %v347
        %v437 = vunpack.c.h.b16 %v347
        %v438 = vunpack.c.l.b16 %v348
        %v439 = vunpack.c.h.b16 %v348
        %v440 = vunpack.c.l.b16 %v349
        %v441 = vunpack.c.h.b16 %v349
        %v442 = vunpack.c.l.b16 %v350
        %v443 = vunpack.c.h.b16 %v350
        %v444 = vunpack.c.l.b16 %v351
        %v445 = vunpack.c.h.b16 %v351
        %v446 = vunpack.c.l.b16 %v352
        %v447 = vunpack.c.h.b16 %v352
        %v448 = vunpack.c.l.b16 %v353
        %v449 = vunpack.c.h.b16 %v353
        %v450 = vunpack.c.l.b16 %v354
        %v451 = vunpack.c.h.b16 %v354
        %v452 = vunpack.c.l.b16 %v355
        %v453 = vunpack.c.h.b16 %v355
        %v454 = vunpack.c.l.b16 %v356
        %v455 = vunpack.c.h.b16 %v356
        %v456 = vunpack.c.l.b16 %v357
        %v457 = vunpack.c.h.b16 %v357
        %v458 = vunpack.c.l.b16 %v358
        %v459 = vunpack.c.h.b16 %v358
        %v460 = vunpack.c.l.b16 %v359
        %v461 = vunpack.c.h.b16 %v359
        %v462 = vunpack.c.l.b16 %v360
        %v463 = vunpack.c.h.b16 %v360
        %v464 = vunpack.c.l.b16 %v361
        %v465 = vunpack.c.h.b16 %v361
        %v466 = vunpack.c.l.b16 %v362
        %v467 = vunpack.c.h.b16 %v362
        %v468 = vunpack.c.l.b16 %v363
        %v469 = vunpack.c.h.b16 %v363
        %v470 = vunpack.c.l.b16 %v364
        %v471 = vunpack.c.h.b16 %v364
        %v472 = vunpack.c.l.b16 %v365
        %v473 = vunpack.c.h.b16 %v365
        %v474 = vunpack.c.l.b16 %v366
        %v475 = vunpack.c.h.b16 %v366
        %v476 = vunpack.c.l.b16 %v367
        %v477 = vunpack.c.h.b16 %v367
        %v478 = vunpack.c.l.b16 %v368
        %v479 = vunpack.c.h.b16 %v368
        %v480 = vunpack.c.l.b16 %v369
        %v481 = vunpack.c.h.b16 %v369
        %v482 = vunpack.c.l.b16 %v370
        %v483 = vunpack.c.h.b16 %v370
        %v484 = vunpack.c.l.b16 %v371
        %v485 = vunpack.c.h.b16 %v371
        %v486 = vunpack.c.l.b16 %v372
        %v487 = vunpack.c.h.b16 %v372
        %v488 = vunpack.c.l.b16 %v373
        %v489 = vunpack.c.h.b16 %v373
        %v490 = vpack.c.b16 %v430, %v426
        %v491 = vpack.c.b16 %v431, %v427
        %v492 = vpack.c.b16 %v432, %v428
        %v493 = vpack.c.b16 %v433, %v429
        %v494 = vpack.c.b16 %v438, %v434
        %v495 = vpack.c.b16 %v439, %v435
        %v496 = vpack.c.b16 %v440, %v436
        %v497 = vpack.c.b16 %v441, %v437
        %v498 = vpack.c.b16 %v446, %v442
        %v499 = vpack.c.b16 %v447, %v443
        %v500 = vpack.c.b16 %v448, %v444
        %v501 = vpack.c.b16 %v449, %v445
        %v502 = vpack.c.b16 %v454, %v450
        %v503 = vpack.c.b16 %v455, %v451
        %v504 = vpack.c.b16 %v456, %v452
        %v505 = vpack.c.b16 %v457, %v453
        %v506 = vpack.c.b16 %v462, %v458
        %v507 = vpack.c.b16 %v463, %v459
        %v508 = vpack.c.b16 %v464, %v460
        %v509 = vpack.c.b16 %v465, %v461
        %v510 = vpack.c.b16 %v470, %v466
        %v511 = vpack.c.b16 %v471, %v467
        %v512 = vpack.c.b16 %v472, %v468
        %v513 = vpack.c.b16 %v473, %v469
        %v514 = vpack.c.b16 %v478, %v474
        %v515 = vpack.c.b16 %v479, %v475
        %v516 = vpack.c.b16 %v480, %v476
        %v517 = vpack.c.b16 %v481, %v477
        %v518 = vpack.c.b16 %v486, %v482
        %v519 = vpack.c.b16 %v487, %v483
        %v520 = vpack.c.b16 %v488, %v484
        %v521 = vpack.c.b16 %v489, %v485
        %554 = vmatpush.bf16.xpose.msra.mxu0 %v518
        %555 = vmatpush.bf16.xpose.msra.mxu0 %v514
        %556 = vmatpush.bf16.xpose.msra.mxu0 %v510
        %557 = vmatpush.bf16.xpose.msra.mxu0 %v506
        %558 = vmatpush.bf16.xpose.msra.mxu0 %v502
        %559 = vmatpush.bf16.xpose.msra.mxu0 %v498
        %560 = vmatpush.bf16.xpose.msra.mxu0 %v494
        %561 = vmatpush.bf16.xpose.msra.mxu0 %v490
        %562 = vmatmul.bf16.gmra.mxu0 %v386
        %v563 = vpop.f32.mrf.mxu0
        %v564 = vadd.f32 0.0, %v563
        %v565 = vpop.f32.mrf.mxu0
        %v566 = vadd.f32 0.0, %v565
        %567 = vdwg.mxu0
        %568 = vmatpush.bf16.xpose.msra.mxu0 %v519
        %569 = vmatpush.bf16.xpose.msra.mxu0 %v515
        %570 = vmatpush.bf16.xpose.msra.mxu0 %v511
        %571 = vmatpush.bf16.xpose.msra.mxu0 %v507
        %572 = vmatpush.bf16.xpose.msra.mxu0 %v503
        %573 = vmatpush.bf16.xpose.msra.mxu0 %v499
        %574 = vmatpush.bf16.xpose.msra.mxu0 %v495
        %575 = vmatpush.bf16.xpose.msra.mxu0 %v491
        %576 = vmatmul.bf16.gmra.mxu0 %v387
        %v577 = vpop.f32.mrf.mxu0
        %v578 = vadd.f32 %v564, %v577
        %v579 = vpop.f32.mrf.mxu0
        %v580 = vadd.f32 %v566, %v579
        %581 = vdwg.mxu0
        %582 = vmatpush.bf16.xpose.msra.mxu0 %v520
        %583 = vmatpush.bf16.xpose.msra.mxu0 %v516
        %584 = vmatpush.bf16.xpose.msra.mxu0 %v512
        %585 = vmatpush.bf16.xpose.msra.mxu0 %v508
        %586 = vmatpush.bf16.xpose.msra.mxu0 %v504
        %587 = vmatpush.bf16.xpose.msra.mxu0 %v500
        %588 = vmatpush.bf16.xpose.msra.mxu0 %v496
        %589 = vmatpush.bf16.xpose.msra.mxu0 %v492
        %590 = vmatmul.bf16.gmra.mxu0 %v388
        %v591 = vpop.f32.mrf.mxu0
        %v592 = vadd.f32 %v578, %v591
        %v593 = vpop.f32.mrf.mxu0
        %v594 = vadd.f32 %v580, %v593
        %595 = vdwg.mxu0
        %596 = vmatpush.bf16.xpose.msra.mxu0 %v521
        %597 = vmatpush.bf16.xpose.msra.mxu0 %v517
        %598 = vmatpush.bf16.xpose.msra.mxu0 %v513
        %599 = vmatpush.bf16.xpose.msra.mxu0 %v509
        %600 = vmatpush.bf16.xpose.msra.mxu0 %v505
        %601 = vmatpush.bf16.xpose.msra.mxu0 %v501
        %602 = vmatpush.bf16.xpose.msra.mxu0 %v497
        %603 = vmatpush.bf16.xpose.msra.mxu0 %v493
        %604 = vmatmul.bf16.gmra.mxu0 %v389
        %v605 = vpop.f32.mrf.mxu0
        %v606 = vadd.f32 %v592, %v605
        %v607 = vpop.f32.mrf.mxu0
        %v608 = vadd.f32 %v594, %v607
        %609 = vdwg.mxu0
        %v610 = vadd.f32 %v340, %v606
        %v611 = vadd.f32 %v341, %v608
        %612 = vst [vmem:[#allocation2] sm:$0xff] %v610
        %613 = vst [vmem:[#allocation2 + $0x8] sm:$0xff] %v611
        %p614 = scmp.eq.s32.totalorder %s25, 1
        // Predicated region
        $region49: #{linear_model_forward.1} parent=35 // pred_check
          %p615 = pneg %p614
        $region50: #{linear_model_forward.1} parent=35 // pred_check_branch
          %617 = sbr.rel (%p615) target = $region52
        $region51: #{linear_model_forward.1} parent=35 // pred_region
          %v618 = vld [vmem:[#allocation2] sm:$0xff]
          %v619 = vld [vmem:[#allocation2 + $0x8] sm:$0xff]
          %v620 = vld [vmem:[%s300] sm:$0x1]
          %v622 = vperm.slane %v620, 0
          %v624 = vadd.f32 %v618, %v622
          %v625 = vadd.f32 %v619, %v622
          %v626 = vmax.f32 %v624, 0.0
          %v627 = vmax.f32 %v625, 0.0
          %v628 = vld [vmem:[%s317] sm:$0xff]
          %v629 = vld [vmem:[%s317 + $0x8] sm:$0xff]
          %v630 = vld [vmem:[%s309] sm:$0xf]
          %v631 = vld [vmem:[%s309 + $0x4] sm:$0xf]
          %v632 = vld [vmem:[%s309 + $0x8] sm:$0xf]
          %v633 = vld [vmem:[%s309 + $0xc] sm:$0xf]
          %v634 = vld [vmem:[%s309 + $0x10] sm:$0xf]
          %v635 = vld [vmem:[%s309 + $0x14] sm:$0xf]
          %v636 = vld [vmem:[%s309 + $0x18] sm:$0xf]
          %v637 = vld [vmem:[%s309 + $0x1c] sm:$0xf]
          %v638 = vld [vmem:[%s309 + $0x20] sm:$0xf]
          %v639 = vld [vmem:[%s309 + $0x24] sm:$0xf]
          %v640 = vld [vmem:[%s309 + $0x28] sm:$0xf]
          %v641 = vld [vmem:[%s309 + $0x2c] sm:$0xf]
          %v642 = vld [vmem:[%s309 + $0x30] sm:$0xf]
          %v643 = vld [vmem:[%s309 + $0x34] sm:$0xf]
          %v644 = vld [vmem:[%s309 + $0x38] sm:$0xf]
          %v645 = vld [vmem:[%s309 + $0x3c] sm:$0xf]
          %v646 = vunpack.c.l.bf16 %v630
          %v647 = vunpack.c.l.bf16 %v631
          %v648 = vunpack.c.l.bf16 %v632
          %v649 = vunpack.c.l.bf16 %v633
          %v650 = vunpack.c.l.bf16 %v634
          %v651 = vunpack.c.l.bf16 %v635
          %v652 = vunpack.c.l.bf16 %v636
          %v653 = vunpack.c.l.bf16 %v637
          %v654 = vunpack.c.l.bf16 %v638
          %v655 = vunpack.c.l.bf16 %v639
          %v656 = vunpack.c.l.bf16 %v640
          %v657 = vunpack.c.l.bf16 %v641
          %v658 = vunpack.c.l.bf16 %v642
          %v659 = vunpack.c.l.bf16 %v643
          %v660 = vunpack.c.l.bf16 %v644
          %v661 = vunpack.c.l.bf16 %v645
          %662 = vmatpush.msra.mxu0 %v661
          %663 = vmatpush.msra.mxu0 %v660
          %664 = vmatpush.msra.mxu0 %v659
          %665 = vmatpush.msra.mxu0 %v658
          %666 = vmatpush.msra.mxu0 %v657
          %667 = vmatpush.msra.mxu0 %v656
          %668 = vmatpush.msra.mxu0 %v655
          %669 = vmatpush.msra.mxu0 %v654
          %670 = vmatpush.msra.mxu0 %v653
          %671 = vmatpush.msra.mxu0 %v652
          %672 = vmatpush.msra.mxu0 %v651
          %673 = vmatpush.msra.mxu0 %v650
          %674 = vmatpush.msra.mxu0 %v649
          %675 = vmatpush.msra.mxu0 %v648
          %676 = vmatpush.msra.mxu0 %v647
          %677 = vmatpush.msra.mxu0 %v646
          %678 = vmatmul.f32.gmra.mxu0 %v626
          %v679 = vpop.f32.mrf.mxu0
          %v680 = vadd.f32 0.0, %v679
          %681 = vmatmul.f32.gmra.mxu0 %v627
          %v682 = vpop.f32.mrf.mxu0
          %v683 = vadd.f32 0.0, %v682
          %684 = vdwg.mxu0
          %v685 = vadd.f32 %v628, %v680
          %v686 = vadd.f32 %v629, %v683
          %687 = vst [vmem:[%s317] sm:$0xff] %v685
          %688 = vst [vmem:[%s317 + $0x8] sm:$0xff] %v686
        $region52: #{linear_model_forward.1} parent=35 // pred_fallthru
          _
        %p689 = scmp.lt.s32.totalorder %s23, 0
        %s690 = scalar_select %p689, %s23, 0
        %s691 = smul.addr %s690, 2
        %s692 = smul.addr %s691, 8
        %s693 = scalar_lea.vmem %s4, %s692
        // Predicated region
        $region53: #{linear_model_forward.1} parent=35 // pred_check
          %p694 = pneg %p168
        $region54: #{linear_model_forward.1} parent=35 // pred_check_branch
          %696 = sbr.rel (%p694) target = $region56
        $region55: #{linear_model_forward.1} parent=35 // pred_region
          _
        $region56: #{linear_model_forward.1} parent=35 // pred_fallthru
          _
        // Predicated region
        $region57: #{linear_model_forward.1} parent=35 // pred_check
          %p697 = pneg %p168
        $region58: #{linear_model_forward.1} parent=35 // pred_check_branch
          %699 = sbr.rel (%p697) target = $region60
        $region59: #{linear_model_forward.1} parent=35 // pred_region
          %p700 = scmp.lt.s32.totalorder %s23, 0
          %s701 = scalar_select %p700, %s23, 0
          %s702 = smul.addr %s701, 2
          %s703 = smul.addr %s702, 8
          %s704 = scalar_lea.vmem %s4, %s703
        $region60: #{linear_model_forward.1} parent=35 // pred_fallthru
          _
      $region36: #{linear_model_forward.1} parent=5 // pred_fallthru
        _
      %p705 = scmp.le.s32.totalorder 2, %s13
      // Predicated region
      $region61: #{linear_model_forward.1} parent=5 // pred_check
        %p706 = pneg %p705
      $region62: #{linear_model_forward.1} parent=5 // pred_check_branch
        %708 = sbr.rel (%p706) target = $region64
      $region63: #{linear_model_forward.1} parent=5 // pred_region
        %s709 = ssub.s32 %s13, 2
      $region64: #{linear_model_forward.1} parent=5 // pred_fallthru
        _
    $region6: #{linear_model_forward.1} parent=1 // loop_footer
      %s17 = sadd.s32 1, %s13
    $region7: #{linear_model_forward.1} parent=1 // loop_footer_branch
      %12 = sbr.rel target = $region3
    $region8: #{linear_model_forward.1} parent=1 // loop_exit
      _
    %710 = vsyncpa [#allocation4], 1
    %s711 = scalar_lea.sflag [#allocation4], 1
    %712 = vsyncpa %s711, 1

</llo_original>
